<compile_context>
chip_gen: v7x
topology: tpu7x:2x2x1
jax: 0.10.0
libtpu: 0.0.40
codegen_flags: <defaults>
</compile_context>

<pallas_src>
import functools

import jax
import jax.numpy as jnp
from jax import lax
from jax.experimental import pallas as pl
from jax.experimental.pallas import tpu as pltpu

_EPS = 1e-5


def _round_up(x, m):
    return (x + m - 1) // m * m


def _supports_buffered():
    try:
        pl.BlockSpec((8, 128), lambda i: (0, 0), pipeline_mode=pl.Buffered(1))
        return True
    except (AttributeError, TypeError):
        return False


_HAS_BUFFERED = _supports_buffered()


def _vmem_budget_bytes():
    """Generation-aware VMEM budget (leave headroom for Mosaic scratch)."""
    cap = 128 * 1024 * 1024
    try:
        cap = int(getattr(pltpu.get_tpu_info(), "vmem_capacity_bytes", cap))
    except Exception:
        pass  # hardware query unavailable -> assume 128 MiB part
    # ~78% of physical: ~50 MiB on v7x (64 MiB/TC), ~100 MiB on v5e/v6e.
    return min(int(0.78 * cap), 110 * 1024 * 1024)


def _residual_layernorm(x_f32, h1, g, beta, c_valid):
    """Residual add + one-pass LayerNorm over the lane (channel) axis."""
    y = x_f32 + h1
    inv_c = 1.0 / c_valid
    s1 = jnp.sum(y, axis=-1, keepdims=True)
    s2 = jnp.sum(y * y, axis=-1, keepdims=True)
    mean = s1 * inv_c
    var = jnp.maximum(s2 * inv_c - mean * mean, 0.0)
    yn = (y - mean) * lax.rsqrt(var + _EPS)
    return yn * g + beta


def _ffn_resident_kernel(x_ref, w1_ref, b1_ref, w2_ref, b2_ref, g_ref, beta_ref,
                         o_ref, *, c_valid):
    x = x_ref[...]
    # linear1 + ReLU; fused cast to the w2 dtype so only one (tm, H) copy lives.
    h = jnp.maximum(
        jnp.dot(x, w1_ref[...], preferred_element_type=jnp.float32) + b1_ref[...],
        0.0).astype(w2_ref.dtype)
    h1 = jnp.dot(h, w2_ref[...], preferred_element_type=jnp.float32) + b2_ref[...]
    out = _residual_layernorm(x.astype(jnp.float32), h1, g_ref[...],
                              beta_ref[...], c_valid)
    o_ref[...] = out.astype(o_ref.dtype)


def _ffn_ktiled_kernel(x_ref, w1_ref, b1_ref, w2_ref, b2_ref, g_ref, beta_ref,
                       o_ref, acc_ref, *, c_valid):
    k = pl.program_id(1)

    @pl.when(k == 0)
    def _():
        acc_ref[...] = jnp.zeros_like(acc_ref)

    x = x_ref[...]
    # ReLU is elementwise over hidden units, so chunking H and summing through
    # w2 is exact: h1 = sum_k relu(x @ w1[:, k] + b1[k]) @ w2[k, :].
    h = jnp.maximum(
        jnp.dot(x, w1_ref[...], preferred_element_type=jnp.float32) + b1_ref[...],
        0.0).astype(w2_ref.dtype)
    acc_ref[...] += jnp.dot(h, w2_ref[...], preferred_element_type=jnp.float32)

    @pl.when(k == pl.num_programs(1) - 1)
    def _():
        h1 = acc_ref[...] + b2_ref[...]
        out = _residual_layernorm(x.astype(jnp.float32), h1, g_ref[...],
                                  beta_ref[...], c_valid)
        o_ref[...] = out.astype(o_ref.dtype)


def feedforward_layer(x, w1, b1, w2, b2, gamma, beta, *,
                      tile_m=None, hidden_tile=None):
    """forward_post of seecoder FeedForwardLayer (ReLU, dropout p=0.0).

    x: (..., C). w1: (C, H), b1: (H,), w2: (H, C), b2/gamma/beta: (C,).
    """
    orig_shape = x.shape
    C = orig_shape[-1]
    H = w1.shape[1]
    x2 = x.reshape(-1, C)
    N = x2.shape[0]

    x_it = jnp.dtype(x.dtype).itemsize
    w_it = jnp.dtype(w1.dtype).itemsize
    budget = _vmem_budget_bytes()

    # ---- tile sizes -----------------------------------------------------
    C_p = _round_up(C, 128)
    H_p = _round_up(H, 128)
    # minimum sublane granule: 8 rows for 4-byte dtypes, 16 for 2-byte, 32 for 1.
    align = {4: 8, 2: 16, 1: 32}.get(x_it, 8)
    n_rows = _round_up(N, align)
    target_tm = tile_m if tile_m is not None else (
        512 if budget > 80 * 1024 * 1024 else 256)
    tm = max(align, _round_up(min(target_tm, n_rows), align))
    # keep >= 2 grid steps so both v7x TensorCores get work under "parallel".
    if tile_m is None and tm >= n_rows and n_rows >= 2 * align:
        tm = max(align, _round_up(n_rows // 2, align))

    def resident_est(tm_):
        w_bytes = (C_p * H_p + H_p * C_p) * w_it            # resident weights
        if not _HAS_BUFFERED:
            w_bytes *= 2                                     # double-buffered
        io = 2 * 2 * tm_ * C_p * x_it                        # x + out, dbl-buf
        inter = tm_ * H_p * 4 + 2 * tm_ * C_p * 4            # f32 h + f32 y/out
        small = (H_p + 3 * C_p) * 4 * 2
        return int(1.25 * (w_bytes + io + inter + small))

    def ktiled_est(tm_, th_):
        w_bytes = 2 * 2 * C_p * th_ * w_it                   # w1+w2 slabs, dbl-buf
        io = 2 * 2 * tm_ * C_p * x_it
        acc = tm_ * C_p * 4
        inter = tm_ * th_ * 4 + 2 * tm_ * C_p * 4
        small = (2 * th_ + 3 * C_p) * 4 * 2
        return int(1.25 * (w_bytes + io + acc + inter + small))

    use_ktile = hidden_tile is not None or resident_est(tm) > budget
    if use_ktile:
        th = hidden_tile if hidden_tile is not None else min(H_p, 2048)
        th = max(128, _round_up(min(th, H_p), 128))
        while th > 128 and ktiled_est(tm, th) > budget:
            th = max(128, _round_up(th // 2, 128))
        while tm > align and ktiled_est(tm, th) > budget:
            tm = max(align, _round_up(tm // 2, align))
        H_p = _round_up(H_p, th)
        vmem_need = ktiled_est(tm, th)
    else:
        th = None
        vmem_need = resident_est(tm)

    N_p = _round_up(N, tm)
    vmem_limit = int(min(budget, max(32 * 1024 * 1024, vmem_need)))

    # ---- pad operands (skip copies when already aligned) -----------------
    def pad2(a, r, c):
        if a.shape == (r, c):
            return a
        return jnp.zeros((r, c), a.dtype).at[:a.shape[0], :a.shape[1]].set(a)

    def pad_vec(v, n):  # -> (1, n) float32
        v = v.astype(jnp.float32).reshape(1, -1)
        if v.shape[1] == n:
            return v
        return jnp.zeros((1, n), jnp.float32).at[:, :v.shape[1]].set(v)

    x_p = pad2(x2, N_p, C_p)
    w1_p = pad2(w1, C_p, H_p)
    w2_p = pad2(w2, H_p, C_p)
    b1_p = pad_vec(b1, H_p)
    b2_p = pad_vec(b2, C_p)
    g_p = pad_vec(gamma, C_p)
    be_p = pad_vec(beta, C_p)

    n_row_tiles = N_p // tm
    cost = pl.CostEstimate(
        flops=int(4 * N_p * C_p * H_p + 10 * N_p * C_p),
        transcendentals=int(N_p),
        bytes_accessed=int(2 * N_p * C_p * x_it
                           + (n_row_tiles if use_ktile else 1)
                           * 2 * C_p * H_p * w_it),
    )

    def const_spec(shp, idx):
        if _HAS_BUFFERED:
            return pl.BlockSpec(shp, idx, pipeline_mode=pl.Buffered(1))
        return pl.BlockSpec(shp, idx)

    if not use_ktile:
        grid = (n_row_tiles,)
        kernel = functools.partial(_ffn_resident_kernel, c_valid=float(C))
        in_specs = [
            pl.BlockSpec((tm, C_p), lambda i: (i, 0)),     # x tile (streamed)
            const_spec((C_p, H_p), lambda i: (0, 0)),      # w1 (resident)
            const_spec((1, H_p), lambda i: (0, 0)),        # b1
            const_spec((H_p, C_p), lambda i: (0, 0)),      # w2 (resident)
            const_spec((1, C_p), lambda i: (0, 0)),        # b2
            const_spec((1, C_p), lambda i: (0, 0)),        # gamma
            const_spec((1, C_p), lambda i: (0, 0)),        # beta
        ]
        out_specs = pl.BlockSpec((tm, C_p), lambda i: (i, 0))
        scratch = []
        dims = ("parallel",)
    else:
        grid = (n_row_tiles, H_p // th)
        kernel = functools.partial(_ffn_ktiled_kernel, c_valid=float(C))
        in_specs = [
            pl.BlockSpec((tm, C_p), lambda i, k: (i, 0)),  # x (resident over k)
            pl.BlockSpec((C_p, th), lambda i, k: (0, k)),  # w1 slab (streamed)
            pl.BlockSpec((1, th), lambda i, k: (0, k)),    # b1 slab
            pl.BlockSpec((th, C_p), lambda i, k: (k, 0)),  # w2 slab (streamed)
            const_spec((1, C_p), lambda i, k: (0, 0)),     # b2
            const_spec((1, C_p), lambda i, k: (0, 0)),     # gamma
            const_spec((1, C_p), lambda i, k: (0, 0)),     # beta
        ]
        out_specs = pl.BlockSpec((tm, C_p), lambda i, k: (i, 0))
        scratch = [pltpu.VMEM((tm, C_p), jnp.float32)]
        dims = ("parallel", "arbitrary")

    out = pl.pallas_call(
        kernel,
        out_shape=jax.ShapeDtypeStruct((N_p, C_p), x.dtype),
        grid_spec=pltpu.PrefetchScalarGridSpec(
            num_scalar_prefetch=0,
            grid=grid,
            in_specs=in_specs,
            out_specs=out_specs,
            scratch_shapes=scratch),
        compiler_params=pltpu.CompilerParams(
            dimension_semantics=dims,
            vmem_limit_bytes=vmem_limit),
        cost_estimate=cost,
    )(x_p, w1_p, b1_p, w2_p, b2_p, g_p, be_p)

    if N_p == N and C_p == C:
        return out.reshape(orig_shape)
    return out[:N, :C].reshape(orig_shape)


# ---------------------------------------------------------------------------

def _xavier_uniform(key, shape, fan_in, fan_out, dtype=jnp.float32):
    bound = (6.0 / (fan_in + fan_out)) ** 0.5
    return jax.random.uniform(key, shape, dtype, minval=-bound, maxval=bound)


def _reference(x, w1, b1, w2, b2, gamma, beta):
    # Pure-JAX reference of forward_post (dropout p=0.0 -> identity).
    h = jnp.maximum(x @ w1 + b1, 0.0)
    h1 = h @ w2 + b2
    y = x + h1
    mean = jnp.mean(y, axis=-1, keepdims=True)
    var = jnp.mean((y - mean) ** 2, axis=-1, keepdims=True)
    return (y - mean) / jnp.sqrt(var + _EPS) * gamma + beta


if __name__ == "__main__":
    key = jax.random.PRNGKey(0)
    kx, k1, k2, kb1, kb2, kg, kbeta, kx2, k3, k4 = jax.random.split(key, 10)

    # Small shapes consistent with the module: x is (seq, batch, channels).
    seq, batch, channels, hidden = 8, 2, 16, 32

    x = jax.random.normal(kx, (seq, batch, channels), jnp.float32)
    w1 = _xavier_uniform(k1, (channels, hidden), channels, hidden)
    b1 = 0.1 * jax.random.normal(kb1, (hidden,), jnp.float32)
    w2 = _xavier_uniform(k2, (hidden, channels), hidden, channels)
    b2 = 0.1 * jax.random.normal(kb2, (channels,), jnp.float32)
    gamma = 1.0 + 0.1 * jax.random.normal(kg, (channels,), jnp.float32)
    beta = 0.05 * jax.random.normal(kbeta, (channels,), jnp.float32)

    # Path 1: resident-weight path.
    out = jax.block_until_ready(
        feedforward_layer(x, w1, b1, w2, b2, gamma, beta))
    ref = _reference(x, w1, b1, w2, b2, gamma, beta)
    assert out.shape == x.shape
    assert jnp.allclose(out, ref, atol=5e-5, rtol=5e-5), \
        float(jnp.max(jnp.abs(out - ref)))

    # Path 2: hidden-dim (K) tiled reduction path (forced via hidden_tile).
    hidden2 = 320                           # pads to 384 -> 3 k-steps at th=128
    x2 = jax.random.normal(kx2, (seq, batch, channels), jnp.float32)
    w1b = _xavier_uniform(k3, (channels, hidden2), channels, hidden2)
    b1b = 0.1 * jax.random.normal(k4, (hidden2,), jnp.float32)
    w2b = _xavier_uniform(jax.random.fold_in(k3, 1), (hidden2, channels),
                          hidden2, channels)
    out2 = jax.block_until_ready(
        feedforward_layer(x2, w1b, b1b, w2b, b2, gamma, beta, hidden_tile=128))
    ref2 = _reference(x2, w1b, b1b, w2b, b2, gamma, beta)
    assert out2.shape == x2.shape
    assert jnp.allclose(out2, ref2, atol=5e-5, rtol=5e-5), \
        float(jnp.max(jnp.abs(out2 - ref2)))

    # TODO(synk): nn.Dropout with p>0 (training mode) is not implemented; the
    # module default p=0.0 makes it an identity in this forward pass.
    print("KERNEL_OK")
</pallas_src>

<mosaic_0001>
module attributes {stable_mosaic.version = 11 : i64} {
  func.func @_ffn_resident_kernel(%arg0: i32, %arg1: memref<8x128xf32, #tpu.memory_space<vmem>>, %arg2: memref<128x128xf32, #tpu.memory_space<vmem>>, %arg3: memref<1x128xf32, #tpu.memory_space<vmem>>, %arg4: memref<128x128xf32, #tpu.memory_space<vmem>>, %arg5: memref<1x128xf32, #tpu.memory_space<vmem>>, %arg6: memref<1x128xf32, #tpu.memory_space<vmem>>, %arg7: memref<1x128xf32, #tpu.memory_space<vmem>>, %arg8: memref<8x128xf32, #tpu.memory_space<vmem>>) attributes {dimension_semantics = [#tpu.dimension_semantics<parallel>], iteration_bounds = array<i64: 2>, scalar_prefetch = 0 : i64, scratch_operands = 0 : i64, tpu.core_type = #tpu.core_type<tc>, window_params = [{transform_indices = @transform_0, window_bounds = array<i64: 8, 128>}, {pipeline_mode = #tpu.pipeline_mode<synchronous>, transform_indices = @transform_1, window_bounds = array<i64: 128, 128>}, {pipeline_mode = #tpu.pipeline_mode<synchronous>, transform_indices = @transform_2, window_bounds = array<i64: 1, 128>}, {pipeline_mode = #tpu.pipeline_mode<synchronous>, transform_indices = @transform_3, window_bounds = array<i64: 128, 128>}, {pipeline_mode = #tpu.pipeline_mode<synchronous>, transform_indices = @transform_4, window_bounds = array<i64: 1, 128>}, {pipeline_mode = #tpu.pipeline_mode<synchronous>, transform_indices = @transform_5, window_bounds = array<i64: 1, 128>}, {pipeline_mode = #tpu.pipeline_mode<synchronous>, transform_indices = @transform_6, window_bounds = array<i64: 1, 128>}, {transform_indices = @transform_7, window_bounds = array<i64: 8, 128>}]} {
    %c0 = arith.constant 0 : index
    %c0_0 = arith.constant 0 : index
    %0 = vector.load %arg1[%c0, %c0_0] : memref<8x128xf32, #tpu.memory_space<vmem>>, vector<8x128xf32>
    %c0_1 = arith.constant 0 : index
    %c0_2 = arith.constant 0 : index
    %1 = vector.load %arg2[%c0_1, %c0_2] : memref<128x128xf32, #tpu.memory_space<vmem>>, vector<128x128xf32>
    %cst = arith.constant dense<0.000000e+00> : vector<8x128xf32>
    %2 = tpu.matmul %0, %1, %cst {dimension_numbers = #tpu.dot_dimension_numbers<[1], [0], [0], [1], [0, 0, 1, 1], [], []>} : vector<8x128xf32>, vector<128x128xf32>, vector<8x128xf32> -> vector<8x128xf32>
    %c0_3 = arith.constant 0 : index
    %c0_4 = arith.constant 0 : index
    %3 = vector.load %arg3[%c0_3, %c0_4] : memref<1x128xf32, #tpu.memory_space<vmem>>, vector<1x128xf32>
    %4 = vector.broadcast %3 : vector<1x128xf32> to vector<8x128xf32>
    %5 = arith.addf %2, %4 : vector<8x128xf32>
    %cst_5 = arith.constant 0.000000e+00 : f32
    %6 = vector.broadcast %cst_5 : f32 to vector<8x128xf32>
    %7 = arith.maximumf %5, %6 : vector<8x128xf32>
    %c0_6 = arith.constant 0 : index
    %c0_7 = arith.constant 0 : index
    %8 = vector.load %arg4[%c0_6, %c0_7] : memref<128x128xf32, #tpu.memory_space<vmem>>, vector<128x128xf32>
    %cst_8 = arith.constant dense<0.000000e+00> : vector<8x128xf32>
    %9 = tpu.matmul %7, %8, %cst_8 {dimension_numbers = #tpu.dot_dimension_numbers<[1], [0], [0], [1], [0, 0, 1, 1], [], []>} : vector<8x128xf32>, vector<128x128xf32>, vector<8x128xf32> -> vector<8x128xf32>
    %c0_9 = arith.constant 0 : index
    %c0_10 = arith.constant 0 : index
    %10 = vector.load %arg5[%c0_9, %c0_10] : memref<1x128xf32, #tpu.memory_space<vmem>>, vector<1x128xf32>
    %11 = vector.broadcast %10 : vector<1x128xf32> to vector<8x128xf32>
    %12 = arith.addf %9, %11 : vector<8x128xf32>
    %c0_11 = arith.constant 0 : index
    %c0_12 = arith.constant 0 : index
    %13 = vector.load %arg6[%c0_11, %c0_12] : memref<1x128xf32, #tpu.memory_space<vmem>>, vector<1x128xf32>
    %c0_13 = arith.constant 0 : index
    %c0_14 = arith.constant 0 : index
    %14 = vector.load %arg7[%c0_13, %c0_14] : memref<1x128xf32, #tpu.memory_space<vmem>>, vector<1x128xf32>
    %15 = arith.addf %0, %12 : vector<8x128xf32>
    %cst_15 = arith.constant dense<0.000000e+00> : vector<8xf32>
    %16 = vector.multi_reduction <add>, %15, %cst_15 [1] : vector<8x128xf32> to vector<8xf32>
    %17 = vector.shape_cast %16 : vector<8xf32> to vector<8x1xf32>
    %18 = arith.mulf %15, %15 : vector<8x128xf32>
    %cst_16 = arith.constant dense<0.000000e+00> : vector<8xf32>
    %19 = vector.multi_reduction <add>, %18, %cst_16 [1] : vector<8x128xf32> to vector<8xf32>
    %20 = vector.shape_cast %19 : vector<8xf32> to vector<8x1xf32>
    %cst_17 = arith.constant 6.250000e-02 : f32
    %21 = vector.broadcast %cst_17 : f32 to vector<8x1xf32>
    %22 = arith.mulf %17, %21 : vector<8x1xf32>
    %cst_18 = arith.constant 6.250000e-02 : f32
    %23 = vector.broadcast %cst_18 : f32 to vector<8x1xf32>
    %24 = arith.mulf %20, %23 : vector<8x1xf32>
    %25 = arith.mulf %22, %22 : vector<8x1xf32>
    %26 = arith.subf %24, %25 : vector<8x1xf32>
    %cst_19 = arith.constant 0.000000e+00 : f32
    %27 = vector.broadcast %cst_19 : f32 to vector<8x1xf32>
    %28 = arith.maximumf %26, %27 : vector<8x1xf32>
    %29 = vector.broadcast %22 : vector<8x1xf32> to vector<8x128xf32>
    %30 = arith.subf %15, %29 : vector<8x128xf32>
    %cst_20 = arith.constant 9.99999974E-6 : f32
    %31 = vector.broadcast %cst_20 : f32 to vector<8x1xf32>
    %32 = arith.addf %28, %31 : vector<8x1xf32>
    %33 = math.rsqrt %32 : vector<8x1xf32>
    %34 = vector.broadcast %33 : vector<8x1xf32> to vector<8x128xf32>
    %35 = arith.mulf %30, %34 : vector<8x128xf32>
    %36 = vector.broadcast %13 : vector<1x128xf32> to vector<8x128xf32>
    %37 = arith.mulf %35, %36 : vector<8x128xf32>
    %38 = vector.broadcast %14 : vector<1x128xf32> to vector<8x128xf32>
    %39 = arith.addf %37, %38 : vector<8x128xf32>
    %c0_21 = arith.constant 0 : index
    %c0_22 = arith.constant 0 : index
    %40 = vector.load %arg8[%c0_21, %c0_22] : memref<8x128xf32, #tpu.memory_space<vmem>>, vector<8x128xf32>
    tpu.vector_store %arg8[%c0_21, %c0_22], %39 {strides = array<i32>} : memref<8x128xf32, #tpu.memory_space<vmem>>, vector<8x128xf32>,
    return
  }
  func.func @transform_0(%arg0: i32) -> (i32, i32) {
    %c0_i32 = arith.constant 0 : i32
    %c0_i32_0 = arith.constant 0 : i32
    return %arg0, %c0_i32 : i32, i32
  }
  func.func @transform_1(%arg0: i32) -> (i32, i32) {
    %c0_i32 = arith.constant 0 : i32
    %c0_i32_0 = arith.constant 0 : i32
    %c0_i32_1 = arith.constant 0 : i32
    return %c0_i32, %c0_i32_0 : i32, i32
  }
  func.func @transform_2(%arg0: i32) -> (i32, i32) {
    %c0_i32 = arith.constant 0 : i32
    %c0_i32_0 = arith.constant 0 : i32
    %c0_i32_1 = arith.constant 0 : i32
    return %c0_i32, %c0_i32_0 : i32, i32
  }
  func.func @transform_3(%arg0: i32) -> (i32, i32) {
    %c0_i32 = arith.constant 0 : i32
    %c0_i32_0 = arith.constant 0 : i32
    %c0_i32_1 = arith.constant 0 : i32
    return %c0_i32, %c0_i32_0 : i32, i32
  }
  func.func @transform_4(%arg0: i32) -> (i32, i32) {
    %c0_i32 = arith.constant 0 : i32
    %c0_i32_0 = arith.constant 0 : i32
    %c0_i32_1 = arith.constant 0 : i32
    return %c0_i32, %c0_i32_0 : i32, i32
  }
  func.func @transform_5(%arg0: i32) -> (i32, i32) {
    %c0_i32 = arith.constant 0 : i32
    %c0_i32_0 = arith.constant 0 : i32
    %c0_i32_1 = arith.constant 0 : i32
    return %c0_i32, %c0_i32_0 : i32, i32
  }
  func.func @transform_6(%arg0: i32) -> (i32, i32) {
    %c0_i32 = arith.constant 0 : i32
    %c0_i32_0 = arith.constant 0 : i32
    %c0_i32_1 = arith.constant 0 : i32
    return %c0_i32, %c0_i32_0 : i32, i32
  }
  func.func @transform_7(%arg0: i32) -> (i32, i32) {
    %c0_i32 = arith.constant 0 : i32
    %c0_i32_0 = arith.constant 0 : i32
    return %arg0, %c0_i32 : i32, i32
  }
}

</mosaic_0001>

<llo_original>
// kernel: tpu_custom_call.1
$region0: #{tpu_custom_call.1}
  #allocation0 [shape = 'u32[]', space=smem, size = 0x4, offset = 0x4, fixed_abs, tag = 'smem constant byte address 0x4 - core index']
  #allocation1 [shape = 'u32[144,128]{1,0:T(1,128)}', space=vmem, size = 0x12000, scoped, tag = 'internal scratch']
  %s0 = inlined_call_operand.hbm [shape: f32[16,128], index: 0, kind: input, shape index: {}]
  %s1 = inlined_call_operand.hbm [shape: f32[128,128], index: 1, kind: input, shape index: {}]
  %s2 = inlined_call_operand.vmem [shape: f32[1,128], index: 2, kind: input, shape index: {}]
  %s3 = inlined_call_operand.hbm [shape: f32[128,128], index: 3, kind: input, shape index: {}]
  %s4 = inlined_call_operand.vmem [shape: f32[1,128], index: 4, kind: input, shape index: {}]
  %s5 = inlined_call_operand.vmem [shape: f32[1,128], index: 5, kind: input, shape index: {}]
  %s6 = inlined_call_operand.vmem [shape: f32[1,128], index: 6, kind: input, shape index: {}]
  %s7 = inlined_call_operand.hbm [shape: f32[16,128], index: 7, kind: output, shape index: {}]
  %s8 = sld [smem:[#allocation0]]
  $region73: #{tpu_custom_call.1} parent=0
    _
  %s10 = ssub.s32 1, %s8
  %s11 = scalar_select 0, %s10, %s8
  $region1: #{tpu_custom_call.1} parent=0
    #allocation2 [shape = 'u8[8192]{0}', space=vmem, size = 0x2000, scoped, tag = 'input window, operand 0']
    #allocation3 [shape = 's32[2]{0}', space=sflag, size = 0x8, scoped, tag = 'scoped memory for tpu_custom_call.1']
    #allocation4 [shape = 's32[2]{0}', space=sflag, size = 0x8, scoped, tag = 'scoped memory for tpu_custom_call.1']
    #allocation5 [shape = 'u8[65536]{0}', space=vmem, size = 0x10000, scoped, tag = 'input window, operand 1, single buffered']
    #allocation6 [shape = 's32[1]{0}', space=sflag, size = 0x4, scoped, tag = 'scoped memory for tpu_custom_call.1']
    #allocation7 [shape = 'u8[65536]{0}', space=vmem, size = 0x10000, scoped, tag = 'input window, operand 3, single buffered']
    #allocation8 [shape = 'u8[8192]{0}', space=vmem, size = 0x2000, scoped, tag = 'output window, operand 0']
    %12 = vsyncpa [#allocation3], 0
    %s13 = scalar_lea.sflag [#allocation3], 1
    %14 = vsyncpa %s13, 0
    %15 = vsyncpa [#allocation6], 0
    %16 = vsyncpa [#allocation4], 0
    %s17 = scalar_lea.sflag [#allocation4], 1
    %18 = vsyncpa %s17, 0
    loop: start=0, step=1, limit=4
    $region2: #{tpu_custom_call.1} parent=1 // loop_pre_header
      _
    $region3: #{tpu_custom_call.1} parent=1 // loop_header
      %s20 = sphi 0, %s24
      %p21 = scmp.ge.s32.totalorder %s20, 4
      %s30 = sphi 0, %s32
      %s33 = sphi 0, %s30
      %s34 = sphi 0, %s33
      %s50 = sphi 0, %s34
      %s54 = sphi 0, %s54
      %s56 = sphi 0, %s54
      %s57 = sphi 0, %s56
      %s71 = sphi 0, %s57
      %s75 = sphi 0, %s75
      %s77 = sphi 0, %s75
      %s78 = sphi 0, %s77
      %s92 = sphi 0, %s78
      %s96 = sphi 0, %s96
      %s98 = sphi 0, %s96
      %s99 = sphi 0, %s98
      %s113 = sphi 0, %s99
      %s117 = sphi 0, %s117
      %s119 = sphi 0, %s117
      %s120 = sphi 0, %s119
      %s134 = sphi 0, %s120
      %s138 = sphi 0, %s138
      %s140 = sphi 0, %s138
      %s141 = sphi 0, %s140
      %s155 = sphi 0, %s141
      %s159 = sphi 0, %s159
      %s161 = sphi 0, %s159
      %s162 = sphi 0, %s161
      %s176 = sphi 0, %s162
      %s182 = sphi 0, %s184
      %s185 = sphi 0, %s182
      %s186 = sphi 0, %s185
      %s202 = sphi 0, %s186
    $region4: #{tpu_custom_call.1} parent=1 // loop_header_branch
      %23 = sbr.rel (%p21) target = $region8
    $region5: #{tpu_custom_call.1} parent=1 // loop_body
      %s25 = ssub.s32 %s20, 1
      %s26 = ssub.s32 %s20, 2
      %s27 = sadd.s32 %s20, 1
      %s28 = ssub.s32 %s20, %s27
      %p29 = scmp.eq.s32.totalorder %s28, 0
      %s31 = sadd.s32 %s30, 1
      %s32 = scalar_select %p29, %s30, %s31
      %p35 = pneg %p29
      %p36 = scmp.eq.s32.totalorder %s20, 1
      %p37 = por %p35, %p36
      %p38 = scmp.ne.s32.totalorder %s30, %s33
      %p39 = scmp.eq.s32.totalorder %s20, 0
      %p40 = por %p38, %p39
      %p41 = scmp.ne.s32.totalorder %s30, %s33
      %p42 = scmp.eq.s32.totalorder %s25, 1
      %p43 = por %p41, %p42
      %p44 = scmp.ne.s32.totalorder %s33, %s34
      %p45 = scmp.eq.s32.totalorder %s25, 0
      %p46 = por %p44, %p45
      %p47 = scmp.ne.s32.totalorder %s33, %s34
      %p48 = scmp.eq.s32.totalorder %s26, 1
      %p49 = por %p47, %p48
      %p51 = scmp.ne.s32.totalorder %s34, %s50
      %p52 = scmp.eq.s32.totalorder %s26, 0
      %p53 = por %p51, %p52
      %s55 = sadd.s32 %s54, 1
      %p58 = scmp.eq.s32.totalorder %s20, 1
      %p59 = scmp.ne.s32.totalorder %s54, %s56
      %p60 = scmp.eq.s32.totalorder %s20, 0
      %p61 = por %p59, %p60
      %p62 = scmp.ne.s32.totalorder %s54, %s56
      %p63 = scmp.eq.s32.totalorder %s25, 1
      %p64 = por %p62, %p63
      %p65 = scmp.ne.s32.totalorder %s56, %s57
      %p66 = scmp.eq.s32.totalorder %s25, 0
      %p67 = por %p65, %p66
      %p68 = scmp.ne.s32.totalorder %s56, %s57
      %p69 = scmp.eq.s32.totalorder %s26, 1
      %p70 = por %p68, %p69
      %p72 = scmp.ne.s32.totalorder %s57, %s71
      %p73 = scmp.eq.s32.totalorder %s26, 0
      %p74 = por %p72, %p73
      %s76 = sadd.s32 %s75, 1
      %p79 = scmp.eq.s32.totalorder %s20, 1
      %p80 = scmp.ne.s32.totalorder %s75, %s77
      %p81 = scmp.eq.s32.totalorder %s20, 0
      %p82 = por %p80, %p81
      %p83 = scmp.ne.s32.totalorder %s75, %s77
      %p84 = scmp.eq.s32.totalorder %s25, 1
      %p85 = por %p83, %p84
      %p86 = scmp.ne.s32.totalorder %s77, %s78
      %p87 = scmp.eq.s32.totalorder %s25, 0
      %p88 = por %p86, %p87
      %p89 = scmp.ne.s32.totalorder %s77, %s78
      %p90 = scmp.eq.s32.totalorder %s26, 1
      %p91 = por %p89, %p90
      %p93 = scmp.ne.s32.totalorder %s78, %s92
      %p94 = scmp.eq.s32.totalorder %s26, 0
      %p95 = por %p93, %p94
      %s97 = sadd.s32 %s96, 1
      %p100 = scmp.eq.s32.totalorder %s20, 1
      %p101 = scmp.ne.s32.totalorder %s96, %s98
      %p102 = scmp.eq.s32.totalorder %s20, 0
      %p103 = por %p101, %p102
      %p104 = scmp.ne.s32.totalorder %s96, %s98
      %p105 = scmp.eq.s32.totalorder %s25, 1
      %p106 = por %p104, %p105
      %p107 = scmp.ne.s32.totalorder %s98, %s99
      %p108 = scmp.eq.s32.totalorder %s25, 0
      %p109 = por %p107, %p108
      %p110 = scmp.ne.s32.totalorder %s98, %s99
      %p111 = scmp.eq.s32.totalorder %s26, 1
      %p112 = por %p110, %p111
      %p114 = scmp.ne.s32.totalorder %s99, %s113
      %p115 = scmp.eq.s32.totalorder %s26, 0
      %p116 = por %p114, %p115
      %s118 = sadd.s32 %s117, 1
      %p121 = scmp.eq.s32.totalorder %s20, 1
      %p122 = scmp.ne.s32.totalorder %s117, %s119
      %p123 = scmp.eq.s32.totalorder %s20, 0
      %p124 = por %p122, %p123
      %p125 = scmp.ne.s32.totalorder %s117, %s119
      %p126 = scmp.eq.s32.totalorder %s25, 1
      %p127 = por %p125, %p126
      %p128 = scmp.ne.s32.totalorder %s119, %s120
      %p129 = scmp.eq.s32.totalorder %s25, 0
      %p130 = por %p128, %p129
      %p131 = scmp.ne.s32.totalorder %s119, %s120
      %p132 = scmp.eq.s32.totalorder %s26, 1
      %p133 = por %p131, %p132
      %p135 = scmp.ne.s32.totalorder %s120, %s134
      %p136 = scmp.eq.s32.totalorder %s26, 0
      %p137 = por %p135, %p136
      %s139 = sadd.s32 %s138, 1
      %p142 = scmp.eq.s32.totalorder %s20, 1
      %p143 = scmp.ne.s32.totalorder %s138, %s140
      %p144 = scmp.eq.s32.totalorder %s20, 0
      %p145 = por %p143, %p144
      %p146 = scmp.ne.s32.totalorder %s138, %s140
      %p147 = scmp.eq.s32.totalorder %s25, 1
      %p148 = por %p146, %p147
      %p149 = scmp.ne.s32.totalorder %s140, %s141
      %p150 = scmp.eq.s32.totalorder %s25, 0
      %p151 = por %p149, %p150
      %p152 = scmp.ne.s32.totalorder %s140, %s141
      %p153 = scmp.eq.s32.totalorder %s26, 1
      %p154 = por %p152, %p153
      %p156 = scmp.ne.s32.totalorder %s141, %s155
      %p157 = scmp.eq.s32.totalorder %s26, 0
      %p158 = por %p156, %p157
      %s160 = sadd.s32 %s159, 1
      %p163 = scmp.eq.s32.totalorder %s20, 1
      %p164 = scmp.ne.s32.totalorder %s159, %s161
      %p165 = scmp.eq.s32.totalorder %s20, 0
      %p166 = por %p164, %p165
      %p167 = scmp.ne.s32.totalorder %s159, %s161
      %p168 = scmp.eq.s32.totalorder %s25, 1
      %p169 = por %p167, %p168
      %p170 = scmp.ne.s32.totalorder %s161, %s162
      %p171 = scmp.eq.s32.totalorder %s25, 0
      %p172 = por %p170, %p171
      %p173 = scmp.ne.s32.totalorder %s161, %s162
      %p174 = scmp.eq.s32.totalorder %s26, 1
      %p175 = por %p173, %p174
      %p177 = scmp.ne.s32.totalorder %s162, %s176
      %p178 = scmp.eq.s32.totalorder %s26, 0
      %p179 = por %p177, %p178
      %s180 = ssub.s32 %s20, %s27
      %p181 = scmp.eq.s32.totalorder %s180, 0
      %s183 = sadd.s32 %s182, 1
      %s184 = scalar_select %p181, %s182, %s183
      %p187 = pneg %p181
      %p188 = scmp.eq.s32.totalorder %s20, 1
      %p189 = por %p187, %p188
      %p190 = scmp.ne.s32.totalorder %s182, %s185
      %p191 = scmp.eq.s32.totalorder %s20, 0
      %p192 = por %p190, %p191
      %p193 = scmp.ne.s32.totalorder %s182, %s185
      %p194 = scmp.eq.s32.totalorder %s25, 1
      %p195 = por %p193, %p194
      %p196 = scmp.ne.s32.totalorder %s185, %s186
      %p197 = scmp.eq.s32.totalorder %s25, 0
      %p198 = por %p196, %p197
      %p199 = scmp.ne.s32.totalorder %s185, %s186
      %p200 = scmp.eq.s32.totalorder %s26, 1
      %p201 = por %p199, %p200
      %p203 = scmp.ne.s32.totalorder %s186, %s202
      %p204 = scmp.eq.s32.totalorder %s26, 0
      %p205 = por %p203, %p204
      %p206 = scmp.le.s32.totalorder 1, %s20
      %p207 = scmp.lt.s32.totalorder %s20, 3
      %p208 = pnand %p206, %p207
      %p209 = pneg %p208
      // Predicated region
      $region9: #{tpu_custom_call.1} parent=5 // pred_check
        _
      $region10: #{tpu_custom_call.1} parent=5 // pred_check_branch
        %211 = sbr.rel (%p208) target = $region12
      $region11: #{tpu_custom_call.1} parent=5 // pred_region
        %s212 = ssub.s32 %s20, 1
        // Predicated region
        $region13: #{tpu_custom_call.1} parent=11 // pred_check
          %p213 = pneg %p67
        $region14: #{tpu_custom_call.1} parent=11 // pred_check_branch
          %215 = sbr.rel (%p213) target = $region16
        $region15: #{tpu_custom_call.1} parent=11 // pred_region
          %s217 = ssub.s32 2048, 2048
          %218 = vsyncadd [#allocation6], %s217
          %s219 = sshll.u32 [#allocation5], 4
          %s220 = int_to_ptr.vmem [resolvable:$true] %s219
          %225 = dma.hbm_to_vmem [thread:$0]  %s1, 2048, %s220, [#allocation6], 128, 128, 8
        $region16: #{tpu_custom_call.1} parent=11 // pred_fallthru
          _
        // Predicated region
        $region17: #{tpu_custom_call.1} parent=11 // pred_check
          %p226 = pneg %p88
        $region18: #{tpu_custom_call.1} parent=11 // pred_check_branch
          %228 = sbr.rel (%p226) target = $region20
        $region19: #{tpu_custom_call.1} parent=11 // pred_region
          _
        $region20: #{tpu_custom_call.1} parent=11 // pred_fallthru
          _
        // Predicated region
        $region21: #{tpu_custom_call.1} parent=11 // pred_check
          %p229 = pneg %p109
        $region22: #{tpu_custom_call.1} parent=11 // pred_check_branch
          %231 = sbr.rel (%p229) target = $region24
        $region23: #{tpu_custom_call.1} parent=11 // pred_region
          %s233 = ssub.s32 2048, 2048
          %234 = vsyncadd [#allocation6], %s233
          %s235 = sshll.u32 [#allocation7], 4
          %s236 = int_to_ptr.vmem [resolvable:$true] %s235
          %241 = dma.hbm_to_vmem [thread:$0]  %s3, 2048, %s236, [#allocation6], 128, 128, 8
        $region24: #{tpu_custom_call.1} parent=11 // pred_fallthru
          _
        // Predicated region
        $region25: #{tpu_custom_call.1} parent=11 // pred_check
          %p242 = pneg %p130
        $region26: #{tpu_custom_call.1} parent=11 // pred_check_branch
          %244 = sbr.rel (%p242) target = $region28
        $region27: #{tpu_custom_call.1} parent=11 // pred_region
          _
        $region28: #{tpu_custom_call.1} parent=11 // pred_fallthru
          _
        // Predicated region
        $region29: #{tpu_custom_call.1} parent=11 // pred_check
          %p245 = pneg %p151
        $region30: #{tpu_custom_call.1} parent=11 // pred_check_branch
          %247 = sbr.rel (%p245) target = $region32
        $region31: #{tpu_custom_call.1} parent=11 // pred_region
          _
        $region32: #{tpu_custom_call.1} parent=11 // pred_fallthru
          _
        // Predicated region
        $region33: #{tpu_custom_call.1} parent=11 // pred_check
          %p248 = pneg %p172
        $region34: #{tpu_custom_call.1} parent=11 // pred_check_branch
          %250 = sbr.rel (%p248) target = $region36
        $region35: #{tpu_custom_call.1} parent=11 // pred_region
          _
        $region36: #{tpu_custom_call.1} parent=11 // pred_fallthru
          _
      $region12: #{tpu_custom_call.1} parent=5 // pred_fallthru
        _
      %p251 = scmp.lt.s32.totalorder %s20, 2
      // Predicated region
      $region37: #{tpu_custom_call.1} parent=5 // pred_check
        %p252 = pneg %p251
      $region38: #{tpu_custom_call.1} parent=5 // pred_check_branch
        %254 = sbr.rel (%p252) target = $region40
      $region39: #{tpu_custom_call.1} parent=5 // pred_region
        // Predicated region
        $region41: #{tpu_custom_call.1} parent=39 // pred_check
          %p255 = pneg %p40
        $region42: #{tpu_custom_call.1} parent=39 // pred_check_branch
          %257 = sbr.rel (%p255) target = $region44
        $region43: #{tpu_custom_call.1} parent=39 // pred_region
          %s258 = sand.u32 %s30, 1
          %s259 = scalar_lea.sflag [#allocation3], %s258
          %s260 = sand.u32 %s30, 1
          %s261 = smul.addr %s260, 8
          %s262 = scalar_lea.vmem [#allocation2], %s261
          %s264 = ssub.s32 128, 128
          %265 = vsyncadd %s259, %s264
          %s266 = smul.addr %s20, 128
          %s267 = scalar_lea.hbm %s0, %s266
          %s269 = sshll.u32 %s262, 4
          %s270 = int_to_ptr.vmem [resolvable:$true] %s269
          %272 = dma.hbm_to_vmem [thread:$0]  %s267, 128, %s270, %s259
        $region44: #{tpu_custom_call.1} parent=39 // pred_fallthru
          _
      $region40: #{tpu_custom_call.1} parent=5 // pred_fallthru
        _
      %p273 = scmp.le.s32.totalorder 1, %s20
      %p274 = scmp.lt.s32.totalorder %s20, 3
      %p275 = pnand %p273, %p274
      %p276 = pneg %p275
      // Predicated region
      $region45: #{tpu_custom_call.1} parent=5 // pred_check
        _
      $region46: #{tpu_custom_call.1} parent=5 // pred_check_branch
        %278 = sbr.rel (%p275) target = $region48
      $region47: #{tpu_custom_call.1} parent=5 // pred_region
        %s279 = ssub.s32 %s20, 1
        %s280 = sand.u32 %s33, 1
        %s281 = scalar_lea.sflag [#allocation3], %s280
        %s282 = sand.u32 %s33, 1
        %s283 = smul.addr %s282, 8
        %s284 = scalar_lea.vmem [#allocation2], %s283
        // Predicated region
        $region49: #{tpu_custom_call.1} parent=47 // pred_check
          %p285 = pneg %p46
        $region50: #{tpu_custom_call.1} parent=47 // pred_check_branch
          %287 = sbr.rel (%p285) target = $region52
        $region51: #{tpu_custom_call.1} parent=47 // pred_region
          %288 = dma.done %s281, 128
        $region52: #{tpu_custom_call.1} parent=47 // pred_fallthru
          _
        // Predicated region
        $region53: #{tpu_custom_call.1} parent=47 // pred_check
          %p289 = pneg %p67
        $region54: #{tpu_custom_call.1} parent=47 // pred_check_branch
          %291 = sbr.rel (%p289) target = $region56
        $region55: #{tpu_custom_call.1} parent=47 // pred_region
          %292 = dma.done [#allocation6], 2048
        $region56: #{tpu_custom_call.1} parent=47 // pred_fallthru
          _
        // Predicated region
        $region57: #{tpu_custom_call.1} parent=47 // pred_check
          %p293 = pneg %p109
        $region58: #{tpu_custom_call.1} parent=47 // pred_check_branch
          %295 = sbr.rel (%p293) target = $region60
        $region59: #{tpu_custom_call.1} parent=47 // pred_region
          %296 = dma.done [#allocation6], 2048
        $region60: #{tpu_custom_call.1} parent=47 // pred_fallthru
          _
        %s297 = sand.u32 %s33, 1
        %s298 = scalar_lea.sflag [#allocation3], %s297
        %s299 = sand.u32 %s33, 1
        %s300 = smul.addr %s299, 8
        %s301 = scalar_lea.vmem [#allocation2], %s300
        %p302 = pneg %p46
        %p303 = pneg %p43
        %p304 = pneg %p67
        %p305 = pneg %p64
        %p306 = pneg %p88
        %p307 = pneg %p85
        %p308 = pneg %p109
        %p309 = pneg %p106
        %p310 = pneg %p130
        %p311 = pneg %p127
        %p312 = pneg %p151
        %p313 = pneg %p148
        %p314 = pneg %p172
        %p315 = pneg %p169
        %p316 = pneg %p198
        %p317 = pneg %p195
        %s318 = sand.u32 %s185, 1
        %s319 = scalar_lea.sflag [#allocation4], %s318
        %s320 = sand.u32 %s185, 1
        %s321 = smul.addr %s320, 8
        %s322 = scalar_lea.vmem [#allocation8], %s321
        %v323 = vld [vmem:[%s284] sm:$0xff]
        %v324 = vld [vmem:[#allocation5] sm:$0xff]
        %v325 = vld [vmem:[#allocation5 + $0x8] sm:$0xff]
        %v326 = vld [vmem:[#allocation5 + $0x10] sm:$0xff]
        %v327 = vld [vmem:[#allocation5 + $0x18] sm:$0xff]
        %v328 = vld [vmem:[#allocation5 + $0x20] sm:$0xff]
        %v329 = vld [vmem:[#allocation5 + $0x28] sm:$0xff]
        %v330 = vld [vmem:[#allocation5 + $0x30] sm:$0xff]
        %v331 = vld [vmem:[#allocation5 + $0x38] sm:$0xff]
        %v332 = vld [vmem:[#allocation5 + $0x40] sm:$0xff]
        %v333 = vld [vmem:[#allocation5 + $0x48] sm:$0xff]
        %v334 = vld [vmem:[#allocation5 + $0x50] sm:$0xff]
        %v335 = vld [vmem:[#allocation5 + $0x58] sm:$0xff]
        %v336 = vld [vmem:[#allocation5 + $0x60] sm:$0xff]
        %v337 = vld [vmem:[#allocation5 + $0x68] sm:$0xff]
        %v338 = vld [vmem:[#allocation5 + $0x70] sm:$0xff]
        %v339 = vld [vmem:[#allocation5 + $0x78] sm:$0xff]
        %v340 = vld [vmem:[%s2] sm:$0x1]
        %v342 = vlaneseq
        %v343 = vshrl.u32 %v342, 7
        %v344 = vsub.s32 0, %v343
        %v345 = vrot.slane %v340, %v344
        %347 = vmatprep.subr.mxu0 0.0
        %348 = vmatpush1.msra.mxu0 %v324
        %349 = vmatprep.subr.mxu0 0.0
        %350 = vmatpush1.msra.mxu0 %v325
        %351 = vmatprep.subr.mxu0 0.0
        %352 = vmatpush1.msra.mxu0 %v326
        %353 = vmatprep.subr.mxu0 0.0
        %354 = vmatpush1.msra.mxu0 %v327
        %355 = vmatprep.subr.mxu0 0.0
        %356 = vmatpush1.msra.mxu0 %v328
        %357 = vmatprep.subr.mxu0 0.0
        %358 = vmatpush1.msra.mxu0 %v329
        %359 = vmatprep.subr.mxu0 0.0
        %360 = vmatpush1.msra.mxu0 %v330
        %361 = vmatprep.subr.mxu0 0.0
        %362 = vmatpush1.msra.mxu0 %v331
        %363 = vmatprep.subr.mxu0 0.0
        %364 = vmatpush1.msra.mxu0 %v332
        %365 = vmatprep.subr.mxu0 0.0
        %366 = vmatpush1.msra.mxu0 %v333
        %367 = vmatprep.subr.mxu0 0.0
        %368 = vmatpush1.msra.mxu0 %v334
        %369 = vmatprep.subr.mxu0 0.0
        %370 = vmatpush1.msra.mxu0 %v335
        %371 = vmatprep.subr.mxu0 0.0
        %372 = vmatpush1.msra.mxu0 %v336
        %373 = vmatprep.subr.mxu0 0.0
        %374 = vmatpush1.msra.mxu0 %v337
        %375 = vmatprep.subr.mxu0 0.0
        %376 = vmatpush1.msra.mxu0 %v338
        %377 = vmatprep.subr.mxu0 0.0
        %378 = vmatpush1.msra.mxu0 %v339
        %379 = vmatprep.subr.mxu0 0.0
        %380 = vmatpush1.msra.mxu0 0.0
        %381 = vmatprep.subr.mxu0 0.0
        %382 = vmatpush1.msra.mxu0 0.0
        %383 = vmatprep.subr.mxu0 0.0
        %384 = vmatpush1.msra.mxu0 0.0
        %385 = vmatprep.subr.mxu0 0.0
        %386 = vmatpush1.msra.mxu0 0.0
        %387 = vmatprep.subr.mxu0 0.0
        %388 = vmatpush1.msra.mxu0 0.0
        %389 = vmatprep.subr.mxu0 0.0
        %390 = vmatpush1.msra.mxu0 0.0
        %391 = vmatprep.subr.mxu0 0.0
        %392 = vmatpush1.msra.mxu0 0.0
        %393 = vmatprep.subr.mxu0 0.0
        %394 = vmatpush1.msra.mxu0 0.0
        %395 = vmatprep.subr.mxu0 0.0
        %396 = vmatpush1.msra.mxu0 0.0
        %397 = vmatprep.subr.mxu0 0.0
        %398 = vmatpush1.msra.mxu0 0.0
        %399 = vmatprep.subr.mxu0 0.0
        %400 = vmatpush1.msra.mxu0 0.0
        %401 = vmatprep.subr.mxu0 0.0
        %402 = vmatpush1.msra.mxu0 0.0
        %403 = vmatprep.subr.mxu0 0.0
        %404 = vmatpush1.msra.mxu0 0.0
        %405 = vmatprep.subr.mxu0 0.0
        %406 = vmatpush1.msra.mxu0 0.0
        %407 = vmatprep.subr.mxu0 0.0
        %408 = vmatpush1.msra.mxu0 0.0
        %409 = vmatprep.subr.mxu0 0.0
        %410 = vmatpush1.msra.mxu0 0.0
        %411 = vmatprep.mubr.f32.mxu0 0.0
        %412 = vmatmul.mubr.f32.gmra.mrb[0].mxu0 %v323
        %v413 = vpop.f32.mrb[0].mxu0
        %v414 = vadd.f32 %v345, %v413
        %v415 = vpop.f32.mrb[0].mxu0
        %416 = vdwg.mxu0
        %v417 = vmax.f32 %v414, 0.0
        %v418 = vld [vmem:[#allocation7] sm:$0xff]
        %v419 = vld [vmem:[#allocation7 + $0x8] sm:$0xff]
        %v420 = vld [vmem:[#allocation7 + $0x10] sm:$0xff]
        %v421 = vld [vmem:[#allocation7 + $0x18] sm:$0xff]
        %v422 = vld [vmem:[#allocation7 + $0x20] sm:$0xff]
        %v423 = vld [vmem:[#allocation7 + $0x28] sm:$0xff]
        %v424 = vld [vmem:[#allocation7 + $0x30] sm:$0xff]
        %v425 = vld [vmem:[#allocation7 + $0x38] sm:$0xff]
        %v426 = vld [vmem:[#allocation7 + $0x40] sm:$0xff]
        %v427 = vld [vmem:[#allocation7 + $0x48] sm:$0xff]
        %v428 = vld [vmem:[#allocation7 + $0x50] sm:$0xff]
        %v429 = vld [vmem:[#allocation7 + $0x58] sm:$0xff]
        %v430 = vld [vmem:[#allocation7 + $0x60] sm:$0xff]
        %v431 = vld [vmem:[#allocation7 + $0x68] sm:$0xff]
        %v432 = vld [vmem:[#allocation7 + $0x70] sm:$0xff]
        %v433 = vld [vmem:[#allocation7 + $0x78] sm:$0xff]
        %v434 = vld [vmem:[%s4] sm:$0x1]
        %v436 = vlaneseq
        %v437 = vshrl.u32 %v436, 7
        %v438 = vsub.s32 0, %v437
        %v439 = vrot.slane %v434, %v438
        %441 = vmatprep.subr.mxu0 0.0
        %442 = vmatpush1.msra.mxu0 %v418
        %443 = vmatprep.subr.mxu0 0.0
        %444 = vmatpush1.msra.mxu0 %v419
        %445 = vmatprep.subr.mxu0 0.0
        %446 = vmatpush1.msra.mxu0 %v420
        %447 = vmatprep.subr.mxu0 0.0
        %448 = vmatpush1.msra.mxu0 %v421
        %449 = vmatprep.subr.mxu0 0.0
        %450 = vmatpush1.msra.mxu0 %v422
        %451 = vmatprep.subr.mxu0 0.0
        %452 = vmatpush1.msra.mxu0 %v423
        %453 = vmatprep.subr.mxu0 0.0
        %454 = vmatpush1.msra.mxu0 %v424
        %455 = vmatprep.subr.mxu0 0.0
        %456 = vmatpush1.msra.mxu0 %v425
        %457 = vmatprep.subr.mxu0 0.0
        %458 = vmatpush1.msra.mxu0 %v426
        %459 = vmatprep.subr.mxu0 0.0
        %460 = vmatpush1.msra.mxu0 %v427
        %461 = vmatprep.subr.mxu0 0.0
        %462 = vmatpush1.msra.mxu0 %v428
        %463 = vmatprep.subr.mxu0 0.0
        %464 = vmatpush1.msra.mxu0 %v429
        %465 = vmatprep.subr.mxu0 0.0
        %466 = vmatpush1.msra.mxu0 %v430
        %467 = vmatprep.subr.mxu0 0.0
        %468 = vmatpush1.msra.mxu0 %v431
        %469 = vmatprep.subr.mxu0 0.0
        %470 = vmatpush1.msra.mxu0 %v432
        %471 = vmatprep.subr.mxu0 0.0
        %472 = vmatpush1.msra.mxu0 %v433
        %473 = vmatprep.subr.mxu0 0.0
        %474 = vmatpush1.msra.mxu0 0.0
        %475 = vmatprep.subr.mxu0 0.0
        %476 = vmatpush1.msra.mxu0 0.0
        %477 = vmatprep.subr.mxu0 0.0
        %478 = vmatpush1.msra.mxu0 0.0
        %479 = vmatprep.subr.mxu0 0.0
        %480 = vmatpush1.msra.mxu0 0.0
        %481 = vmatprep.subr.mxu0 0.0
        %482 = vmatpush1.msra.mxu0 0.0
        %483 = vmatprep.subr.mxu0 0.0
        %484 = vmatpush1.msra.mxu0 0.0
        %485 = vmatprep.subr.mxu0 0.0
        %486 = vmatpush1.msra.mxu0 0.0
        %487 = vmatprep.subr.mxu0 0.0
        %488 = vmatpush1.msra.mxu0 0.0
        %489 = vmatprep.subr.mxu0 0.0
        %490 = vmatpush1.msra.mxu0 0.0
        %491 = vmatprep.subr.mxu0 0.0
        %492 = vmatpush1.msra.mxu0 0.0
        %493 = vmatprep.subr.mxu0 0.0
        %494 = vmatpush1.msra.mxu0 0.0
        %495 = vmatprep.subr.mxu0 0.0
        %496 = vmatpush1.msra.mxu0 0.0
        %497 = vmatprep.subr.mxu0 0.0
        %498 = vmatpush1.msra.mxu0 0.0
        %499 = vmatprep.subr.mxu0 0.0
        %500 = vmatpush1.msra.mxu0 0.0
        %501 = vmatprep.subr.mxu0 0.0
        %502 = vmatpush1.msra.mxu0 0.0
        %503 = vmatprep.subr.mxu0 0.0
        %504 = vmatpush1.msra.mxu0 0.0
        %505 = vmatprep.mubr.f32.mxu0 0.0
        %506 = vmatmul.mubr.f32.gmra.mrb[0].mxu0 %v417
        %v507 = vpop.f32.mrb[0].mxu0
        %v508 = vadd.f32 %v439, %v507
        %v509 = vpop.f32.mrb[0].mxu0
        %510 = vdwg.mxu0
        %v511 = vld [vmem:[%s5] sm:$0x1]
        %v512 = vld [vmem:[%s6] sm:$0x1]
        %v513 = vadd.f32 %v323, %v508
        %514 = vadd.xlane.f32.xlu0 %v513
        %v515 = vpop.xlane.xlu0 %514
        %v516 = vmul.f32 %v513, %v513
        %517 = vadd.xlane.f32.xlu0 %v516
        %v518 = vpop.xlane.xlu0 %517
        %v519 = vmul.f32 %v515, 0.0625
        %v520 = vmul.f32 %v518, 0.0625
        %v521 = vmul.f32 %v519, %v519
        %v522 = vsub.f32 %v520, %v521
        %v523 = vmax.f32 %v522, 0.0
        %v524 = vsub.f32 %v513, %v519
        %v525 = vadd.f32 %v523, 1e-05
        %v526 = vrsqrt.pop %v525
        %v527 = vmul.f32 %v524, %v526
        %v529 = vlaneseq
        %v530 = vshrl.u32 %v529, 7
        %v531 = vsub.s32 0, %v530
        %v532 = vrot.slane %v511, %v531
        %v534 = vmul.f32 %v527, %v532
        %v536 = vlaneseq
        %v537 = vshrl.u32 %v536, 7
        %v538 = vsub.s32 0, %v537
        %v539 = vrot.slane %v512, %v538
        %v541 = vadd.f32 %v534, %v539
        %542 = vst [vmem:[%s322] sm:$0xff] %v541
        %s543 = sand.u32 %s185, 1
        %s544 = scalar_lea.sflag [#allocation4], %s543
        %s545 = sand.u32 %s185, 1
        %s546 = smul.addr %s545, 8
        %s547 = scalar_lea.vmem [#allocation8], %s546
        // Predicated region
        $region61: #{tpu_custom_call.1} parent=47 // pred_check
          %p548 = pneg %p195
        $region62: #{tpu_custom_call.1} parent=47 // pred_check_branch
          %550 = sbr.rel (%p548) target = $region64
        $region63: #{tpu_custom_call.1} parent=47 // pred_region
          %s552 = ssub.s32 128, 128
          %553 = vsyncadd %s544, %s552
          %s554 = smul.addr %s25, 128
          %s555 = scalar_lea.hbm %s7, %s554
          %s557 = sshll.u32 %s547, 4
          %s558 = int_to_ptr.vmem [resolvable:$true] %s557
          %560 = dma.vmem_to_hbm [thread:$0]  %s558, 128, %s555, %s544
        $region64: #{tpu_custom_call.1} parent=47 // pred_fallthru
          _
      $region48: #{tpu_custom_call.1} parent=5 // pred_fallthru
        _
      %p561 = scmp.le.s32.totalorder 2, %s20
      // Predicated region
      $region65: #{tpu_custom_call.1} parent=5 // pred_check
        %p562 = pneg %p561
      $region66: #{tpu_custom_call.1} parent=5 // pred_check_branch
        %564 = sbr.rel (%p562) target = $region68
      $region67: #{tpu_custom_call.1} parent=5 // pred_region
        %s565 = ssub.s32 %s20, 2
        // Predicated region
        $region69: #{tpu_custom_call.1} parent=67 // pred_check
          %p566 = pneg %p201
        $region70: #{tpu_custom_call.1} parent=67 // pred_check_branch
          %568 = sbr.rel (%p566) target = $region72
        $region71: #{tpu_custom_call.1} parent=67 // pred_region
          %s569 = sand.u32 %s186, 1
          %s570 = scalar_lea.sflag [#allocation4], %s569
          %s571 = sand.u32 %s186, 1
          %s572 = smul.addr %s571, 8
          %s573 = scalar_lea.vmem [#allocation8], %s572
          %574 = dma.done %s570, 128
        $region72: #{tpu_custom_call.1} parent=67 // pred_fallthru
          _
      $region68: #{tpu_custom_call.1} parent=5 // pred_fallthru
        _
    $region6: #{tpu_custom_call.1} parent=1 // loop_footer
      %s24 = sadd.s32 1, %s20
    $region7: #{tpu_custom_call.1} parent=1 // loop_footer_branch
      %19 = sbr.rel target = $region3
    $region8: #{tpu_custom_call.1} parent=1 // loop_exit
      _
    %575 = vsyncpa [#allocation3], 1
    %s576 = scalar_lea.sflag [#allocation3], 1
    %577 = vsyncpa %s576, 1
    %578 = vsyncpa [#allocation6], 1
    %579 = vsyncpa [#allocation4], 1
    %s580 = scalar_lea.sflag [#allocation4], 1
    %581 = vsyncpa %s580, 1

</llo_original>
